<compile_context>
chip_gen: v7x
topology: tpu7x:2x2x1
jax: 0.10.0
libtpu: 0.0.40
codegen_flags: <defaults>
</compile_context>

<pallas_src>
import numpy as np
import jax
import jax.numpy as jnp
from jax import lax
from jax.experimental import pallas as pl
from jax.experimental.pallas import tpu as pltpu

BN_EPS = 1e-5


# ----------------------------- Pallas kernel ---------------------------------
def _conv_stem_kernel(p_ref, w1_ref, b1_ref, w2_ref, b2_ref, w3_ref, b3_ref,
                      o_ref):
    """Fused ConvStem on one row-tile of tokens (pure matmul chain).

    p_ref  : (Rt, 49*Cin+3) bf16  7x7 input patches + [ii, jj, ii*jj] flags
    w1_ref : (49*Cin+3, 9*C1+3) bf16  layer-1 weights (BN1 scale folded) with
                                      identity pass-through for the 3 flags
    b1_ref : (1, 9*C1+3) f32          BN1 shift (0 for the flag columns)
    w2_ref : (9*C1+3, C2) bf16        layer-2 weights (BN2 scale folded) with
                                      [-e_row; -e_col; +e_corner] border rows
    b2_ref : (1, C2) f32              BN2 shift
    w3_ref : (C2, E) bf16             1x1 conv weights
    b3_ref : (1, E) f32               1x1 conv bias
    o_ref  : (Rt, E) f32
    """
    # layer 1: 3x3/s2 conv (patch matmul) + BN(eval) + ReLU   [f32 epilogue]
    z1 = jnp.dot(p_ref[...], w1_ref[...], preferred_element_type=jnp.float32)
    z1 = jnp.maximum(z1 + b1_ref[...], 0.0)

    # layer 2: 3x3/s2 conv over layer-1 grid + BN + ReLU; the border fix-up is
    # inside w2 (flag columns of z1 are exactly 0/1 after the zero-bias ReLU).
    z2 = jnp.dot(z1.astype(jnp.bfloat16), w2_ref[...],
                 preferred_element_type=jnp.float32)
    z2 = jnp.maximum(z2 + b2_ref[...], 0.0)

    # layer 3: 1x1 conv + bias (lane-dense (Rt, E) store)
    y = jnp.dot(z2.astype(jnp.bfloat16), w3_ref[...],
                preferred_element_type=jnp.float32)
    o_ref[...] = (y + b3_ref[...]).astype(o_ref.dtype)


def _row_tiling(n_tok):
    """Return (row_tile, padded_row_count).

    Large inputs: 512-row tiles (multiple of 256 for the 256-tall MXU on
    v6e/v7x; per-step VMEM stays at a few MiB on every generation), padded to
    an even number of tiles for a clean 2-way v7x TensorCore split.
    Small inputs: one tile, rounded up to the bf16 sublane quantum.
    """
    if n_tok > 512:
        rt = 512
        n_grid = -(-n_tok // rt)          # ceil
        if n_grid % 2:
            n_grid += 1                    # even grid for v7x megacore split
        return rt, n_grid * rt
    rt = max(16, ((n_tok + 15) // 16) * 16)
    return rt, rt


# ------------------------------- wrapper --------------------------------------
def conv_stem_forward(x_nchw, params):
    """Pallas-backed ConvStem forward. Output: (B, (H/4)*(W/4), embed_dim)."""
    w1, w2, w3 = params["w1"], params["w2"], params["w3"]
    c1, cin = w1.shape[0], w1.shape[1]
    c2 = w2.shape[0]
    embed = w3.shape[0]

    bsz, cx, hh, ww = x_nchw.shape
    assert cx == cin and hh % 4 == 0 and ww % 4 == 0
    ho, wo = hh // 4, ww // 4                       # token grid (patch_size = 4)
    n_tok = bsz * ho * wo
    kp, m1 = 49 * cin, 9 * c1
    k1, n1 = kp + 3, m1 + 3                          # +3 border-flag channels

    # ---- constant folding (tiny, once per call) ------------------------------
    s1 = params["g1"] / jnp.sqrt(params["rv1"] + BN_EPS)
    t1 = params["b1"] - params["rm1"] * s1
    s2 = params["g2"] / jnp.sqrt(params["rv2"] + BN_EPS)
    t2 = params["b2"] - params["rm2"] * s2

    # Layer-1 weights as (49*Cin, 9*C1) over the composite 7x7 patch; column
    # block (a,b) produces layer-1 output at patch-local (a,b); BN1 scale folded.
    row_blocks = []
    for ph in range(7):
        for pw in range(7):
            cols = []
            for a in range(3):
                for b in range(3):
                    kh, kw = ph - 2 * a, pw - 2 * b
                    if 0 <= kh < 3 and 0 <= kw < 3:
                        cols.append(jnp.transpose(w1[:, :, kh, kw]))   # (Cin, C1)
                    else:
                        cols.append(jnp.zeros((cin, c1), w1.dtype))
            row_blocks.append(jnp.concatenate(cols, axis=1))            # (Cin, 9*C1)
    w1_eff = jnp.concatenate(row_blocks, axis=0) * jnp.tile(s1, 9)[None, :]

    # Augment with an identity pass-through for the 3 border-flag columns so
    # they survive matmul 1 + zero-bias ReLU unchanged (flags are exactly 0/1).
    w1_aug = jnp.zeros((k1, n1), jnp.float32)
    w1_aug = w1_aug.at[:kp, :m1].set(w1_eff)
    w1_aug = w1_aug.at[kp:, m1:].set(jnp.eye(3, dtype=jnp.float32))
    w1_aug = w1_aug.astype(jnp.bfloat16)
    b1_aug = jnp.concatenate([jnp.tile(t1, 9), jnp.zeros(3, t1.dtype)])[None, :]

    # Layer-2 weights (9*C1, C2), BN2 scale folded.  bf16-round FIRST, then
    # derive the border correction from the rounded values so the in-kernel
    # cancellation of the relu(t1) "fake padding" contribution is exact.
    w2_tok = jnp.concatenate(
        [jnp.transpose(w2[:, :, a, b]) for a in range(3) for b in range(3)],
        axis=0)                                                          # (9*C1, C2)
    w2f = (w2_tok * s2[None, :]).astype(jnp.bfloat16).astype(jnp.float32)
    u = jnp.maximum(t1, 0.0).astype(jnp.bfloat16).astype(jnp.float32)   # relu(shift1)
    e_row = jnp.tile(u, 3) @ w2f[0:3 * c1, :]                               # a == 0
    e_col = u @ (w2f[0:c1] + w2f[3 * c1:4 * c1] + w2f[6 * c1:7 * c1])       # b == 0
    e_corner = u @ w2f[0:c1]                                                # a == b == 0
    w2_aug = jnp.concatenate(
        [w2f, jnp.stack([-e_row, -e_col, e_corner], axis=0)],
        axis=0).astype(jnp.bfloat16)                                     # (9*C1+3, C2)
    b2_eff = t2[None, :]

    w3_eff = jnp.transpose(w3[:, :, 0, 0]).astype(jnp.bfloat16)          # (C2, E)
    b3_eff = params["bias3"][None, :]                                    # (1, E)

    # ---- 7x7 / stride-4 patch extraction (single pass, emitted in bf16) -----
    x_b = jnp.transpose(x_nchw, (0, 2, 3, 1)).astype(jnp.bfloat16)
    xp = jnp.pad(x_b, ((0, 0), (3, 0), (3, 0), (0, 0)))
    taps = []
    for ph in range(7):
        for pw in range(7):
            taps.append(xp[:, ph:ph + 4 * (ho - 1) + 1:4,
                           pw:pw + 4 * (wo - 1) + 1:4, :])               # (B, ho, wo, Cin)
    patches = jnp.concatenate(taps, axis=-1).reshape(n_tok, kp)

    # Border flags ride along as 3 extra (exact 0/1) bf16 columns.
    i0 = (jnp.arange(ho) == 0).astype(jnp.bfloat16)
    j0 = (jnp.arange(wo) == 0).astype(jnp.bfloat16)
    ii = jnp.broadcast_to(i0[:, None], (ho, wo))
    jj = jnp.broadcast_to(j0[None, :], (ho, wo))
    flags = jnp.stack([ii, jj, ii * jj], axis=-1)
    flags = jnp.broadcast_to(flags[None], (bsz, ho, wo, 3)).reshape(n_tok, 3)
    patches = jnp.concatenate([patches, flags], axis=1)                  # (n_tok, k1)

    # ---- row tiling / grid ---------------------------------------------------
    rt, n_rows = _row_tiling(n_tok)
    if n_rows != n_tok:
        patches = jnp.pad(patches, ((0, n_rows - n_tok), (0, 0)))
    grid = (n_rows // rt,)

    flops = 2 * n_rows * (k1 * n1 + n1 * c2 + c2 * embed)
    bytes_accessed = (n_rows * (k1 * 2 + embed * 4)                      # patches + out
                      + 2 * (k1 * n1 + n1 * c2 + c2 * embed)             # bf16 weights
                      + 4 * (n1 + c2 + embed))                           # f32 biases
    cost = pl.CostEstimate(flops=flops, transcendentals=0,
                           bytes_accessed=bytes_accessed)

    out = pl.pallas_call(
        _conv_stem_kernel,
        out_shape=jax.ShapeDtypeStruct((n_rows, embed), jnp.float32),
        grid=grid,
        in_specs=[
            pl.BlockSpec((rt, k1), lambda r: (r, 0)),        # patches (row-tiled)
            pl.BlockSpec((k1, n1), lambda r: (0, 0)),        # w1_aug (VMEM-resident)
            pl.BlockSpec((1, n1), lambda r: (0, 0)),         # b1_aug
            pl.BlockSpec((n1, c2), lambda r: (0, 0)),        # w2_aug
            pl.BlockSpec((1, c2), lambda r: (0, 0)),         # b2
            pl.BlockSpec((c2, embed), lambda r: (0, 0)),     # w3
            pl.BlockSpec((1, embed), lambda r: (0, 0)),      # b3
        ],
        out_specs=pl.BlockSpec((rt, embed), lambda r: (r, 0)),
        compiler_params=pltpu.CompilerParams(
            dimension_semantics=("parallel",),
            vmem_limit_bytes=32 * 1024 * 1024),
        cost_estimate=cost,
    )(patches, w1_aug, b1_aug, w2_aug, b2_eff, w3_eff, b3_eff)

    return out[:n_tok].reshape(bsz, ho * wo, embed)          # norm = Identity


# ------------------------- parameter init (eval-mode BN) ----------------------
def init_params(key, embed_dim=128, in_chans=3):
    ks = jax.random.split(key, 12)
    c1, c2 = embed_dim // 8, embed_dim // 4
    return {
        "w1": 0.2 * jax.random.normal(ks[0], (c1, in_chans, 3, 3), jnp.float32),
        "g1": 1.0 + 0.1 * jax.random.normal(ks[1], (c1,), jnp.float32),
        "b1": 0.1 * jax.random.normal(ks[2], (c1,), jnp.float32),
        "rm1": 0.05 * jax.random.normal(ks[3], (c1,), jnp.float32),
        "rv1": 1.0 + 0.1 * jax.random.uniform(ks[4], (c1,), jnp.float32),
        "w2": 0.2 * jax.random.normal(ks[5], (c2, c1, 3, 3), jnp.float32),
        "g2": 1.0 + 0.1 * jax.random.normal(ks[6], (c2,), jnp.float32),
        "b2": 0.1 * jax.random.normal(ks[7], (c2,), jnp.float32),
        "rm2": 0.05 * jax.random.normal(ks[8], (c2,), jnp.float32),
        "rv2": 1.0 + 0.1 * jax.random.uniform(ks[9], (c2,), jnp.float32),
        "w3": 0.2 * jax.random.normal(ks[10], (embed_dim, c2, 1, 1), jnp.float32),
        "bias3": 0.1 * jax.random.normal(ks[11], (embed_dim,), jnp.float32),
    }


# ------------------------- pure-JAX reference (lax.conv, f32) -----------------
def ref_forward(x_nchw, params):
    dn = ("NCHW", "OIHW", "NCHW")

    def bn_relu(y, g, b, rm, rv):
        y = (y - rm[None, :, None, None]) / jnp.sqrt(rv + BN_EPS)[None, :, None, None]
        y = y * g[None, :, None, None] + b[None, :, None, None]
        return jnp.maximum(y, 0.0)

    y = lax.conv_general_dilated(x_nchw, params["w1"], (2, 2),
                                 ((1, 1), (1, 1)), dimension_numbers=dn)
    y = bn_relu(y, params["g1"], params["b1"], params["rm1"], params["rv1"])
    y = lax.conv_general_dilated(y, params["w2"], (2, 2),
                                 ((1, 1), (1, 1)), dimension_numbers=dn)
    y = bn_relu(y, params["g2"], params["b2"], params["rm2"], params["rv2"])
    y = lax.conv_general_dilated(y, params["w3"], (1, 1),
                                 ((0, 0), (0, 0)), dimension_numbers=dn)
    y = y + params["bias3"][None, :, None, None]
    b, e, ho, wo = y.shape
    return jnp.transpose(y.reshape(b, e, ho * wo), (0, 2, 1))


# ---------------------------------- main --------------------------------------
if __name__ == "__main__":
    B, C, H, W = 2, 3, 16, 16          # ConvStem hardcodes in_chans=3
    EMBED_DIM = 128                    # divisible by 8; lane-dense output

    key = jax.random.PRNGKey(0)
    kx, kp_ = jax.random.split(key)
    x = jax.random.normal(kx, (B, C, H, W), jnp.float32)
    params = init_params(kp_, embed_dim=EMBED_DIM, in_chans=C)

    fwd = jax.jit(conv_stem_forward)
    out = jax.block_until_ready(fwd(x, params))
    ref = jax.block_until_ready(ref_forward(x, params))

    assert out.shape == (B, (H // 4) * (W // 4), EMBED_DIM), out.shape
    # Tolerance sized for bf16 MXU operands with f32 accumulation (the f32
    # lax.conv reference is exact); a structural bug would be O(1), not O(1e-2).
    np.testing.assert_allclose(np.asarray(out), np.asarray(ref),
                               rtol=2e-2, atol=5e-2)
    print("KERNEL_OK")
</pallas_src>

<mosaic_0001>
module attributes {stable_mosaic.version = 11 : i64} {
  func.func @_conv_stem_kernel(%arg0: i32, %arg1: memref<32x150xbf16, #tpu.memory_space<vmem>>, %arg2: memref<150x147xbf16, #tpu.memory_space<vmem>>, %arg3: memref<1x147xf32, #tpu.memory_space<vmem>>, %arg4: memref<147x32xbf16, #tpu.memory_space<vmem>>, %arg5: memref<1x32xf32, #tpu.memory_space<vmem>>, %arg6: memref<32x128xbf16, #tpu.memory_space<vmem>>, %arg7: memref<1x128xf32, #tpu.memory_space<vmem>>, %arg8: memref<32x128xf32, #tpu.memory_space<vmem>>) attributes {dimension_semantics = [#tpu.dimension_semantics<parallel>], iteration_bounds = array<i64: 1>, scalar_prefetch = 0 : i64, scratch_operands = 0 : i64, tpu.core_type = #tpu.core_type<tc>, window_params = [{transform_indices = @transform_0, window_bounds = array<i64: 32, 150>}, {pipeline_mode = #tpu.pipeline_mode<synchronous>, transform_indices = @transform_1, window_bounds = array<i64: 150, 147>}, {pipeline_mode = #tpu.pipeline_mode<synchronous>, transform_indices = @transform_2, window_bounds = array<i64: 1, 147>}, {pipeline_mode = #tpu.pipeline_mode<synchronous>, transform_indices = @transform_3, window_bounds = array<i64: 147, 32>}, {pipeline_mode = #tpu.pipeline_mode<synchronous>, transform_indices = @transform_4, window_bounds = array<i64: 1, 32>}, {pipeline_mode = #tpu.pipeline_mode<synchronous>, transform_indices = @transform_5, window_bounds = array<i64: 32, 128>}, {pipeline_mode = #tpu.pipeline_mode<synchronous>, transform_indices = @transform_6, window_bounds = array<i64: 1, 128>}, {transform_indices = @transform_7, window_bounds = array<i64: 32, 128>}]} {
    %c0 = arith.constant 0 : index
    %c0_0 = arith.constant 0 : index
    %0 = vector.load %arg1[%c0, %c0_0] : memref<32x150xbf16, #tpu.memory_space<vmem>>, vector<32x150xbf16>
    %c0_1 = arith.constant 0 : index
    %c0_2 = arith.constant 0 : index
    %1 = vector.load %arg2[%c0_1, %c0_2] : memref<150x147xbf16, #tpu.memory_space<vmem>>, vector<150x147xbf16>
    %cst = arith.constant dense<0.000000e+00> : vector<32x147xf32>
    %2 = tpu.matmul %0, %1, %cst {dimension_numbers = #tpu.dot_dimension_numbers<[1], [0], [0], [1], [0, 0, 1, 1], [], []>} : vector<32x150xbf16>, vector<150x147xbf16>, vector<32x147xf32> -> vector<32x147xf32>
    %c0_3 = arith.constant 0 : index
    %c0_4 = arith.constant 0 : index
    %3 = vector.load %arg3[%c0_3, %c0_4] : memref<1x147xf32, #tpu.memory_space<vmem>>, vector<1x147xf32>
    %4 = vector.broadcast %3 : vector<1x147xf32> to vector<32x147xf32>
    %5 = arith.addf %2, %4 : vector<32x147xf32>
    %cst_5 = arith.constant 0.000000e+00 : f32
    %6 = vector.broadcast %cst_5 : f32 to vector<32x147xf32>
    %7 = arith.maximumf %5, %6 : vector<32x147xf32>
    %8 = arith.truncf %7 : vector<32x147xf32> to vector<32x147xbf16>
    %c0_6 = arith.constant 0 : index
    %c0_7 = arith.constant 0 : index
    %9 = vector.load %arg4[%c0_6, %c0_7] : memref<147x32xbf16, #tpu.memory_space<vmem>>, vector<147x32xbf16>
    %cst_8 = arith.constant dense<0.000000e+00> : vector<32x32xf32>
    %10 = tpu.matmul %8, %9, %cst_8 {dimension_numbers = #tpu.dot_dimension_numbers<[1], [0], [0], [1], [0, 0, 1, 1], [], []>} : vector<32x147xbf16>, vector<147x32xbf16>, vector<32x32xf32> -> vector<32x32xf32>
    %c0_9 = arith.constant 0 : index
    %c0_10 = arith.constant 0 : index
    %11 = vector.load %arg5[%c0_9, %c0_10] : memref<1x32xf32, #tpu.memory_space<vmem>>, vector<1x32xf32>
    %12 = vector.broadcast %11 : vector<1x32xf32> to vector<32x32xf32>
    %13 = arith.addf %10, %12 : vector<32x32xf32>
    %cst_11 = arith.constant 0.000000e+00 : f32
    %14 = vector.broadcast %cst_11 : f32 to vector<32x32xf32>
    %15 = arith.maximumf %13, %14 : vector<32x32xf32>
    %16 = arith.truncf %15 : vector<32x32xf32> to vector<32x32xbf16>
    %c0_12 = arith.constant 0 : index
    %c0_13 = arith.constant 0 : index
    %17 = vector.load %arg6[%c0_12, %c0_13] : memref<32x128xbf16, #tpu.memory_space<vmem>>, vector<32x128xbf16>
    %cst_14 = arith.constant dense<0.000000e+00> : vector<32x128xf32>
    %18 = tpu.matmul %16, %17, %cst_14 {dimension_numbers = #tpu.dot_dimension_numbers<[1], [0], [0], [1], [0, 0, 1, 1], [], []>} : vector<32x32xbf16>, vector<32x128xbf16>, vector<32x128xf32> -> vector<32x128xf32>
    %c0_15 = arith.constant 0 : index
    %c0_16 = arith.constant 0 : index
    %19 = vector.load %arg7[%c0_15, %c0_16] : memref<1x128xf32, #tpu.memory_space<vmem>>, vector<1x128xf32>
    %20 = vector.broadcast %19 : vector<1x128xf32> to vector<32x128xf32>
    %21 = arith.addf %18, %20 : vector<32x128xf32>
    %c0_17 = arith.constant 0 : index
    %c0_18 = arith.constant 0 : index
    %22 = vector.load %arg8[%c0_17, %c0_18] : memref<32x128xf32, #tpu.memory_space<vmem>>, vector<32x128xf32>
    tpu.vector_store %arg8[%c0_17, %c0_18], %21 {strides = array<i32>} : memref<32x128xf32, #tpu.memory_space<vmem>>, vector<32x128xf32>,
    return
  }
  func.func @transform_0(%arg0: i32) -> (i32, i32) {
    %c0_i32 = arith.constant 0 : i32
    %c0_i32_0 = arith.constant 0 : i32
    return %arg0, %c0_i32 : i32, i32
  }
  func.func @transform_1(%arg0: i32) -> (i32, i32) {
    %c0_i32 = arith.constant 0 : i32
    %c0_i32_0 = arith.constant 0 : i32
    %c0_i32_1 = arith.constant 0 : i32
    return %c0_i32, %c0_i32_0 : i32, i32
  }
  func.func @transform_2(%arg0: i32) -> (i32, i32) {
    %c0_i32 = arith.constant 0 : i32
    %c0_i32_0 = arith.constant 0 : i32
    %c0_i32_1 = arith.constant 0 : i32
    return %c0_i32, %c0_i32_0 : i32, i32
  }
  func.func @transform_3(%arg0: i32) -> (i32, i32) {
    %c0_i32 = arith.constant 0 : i32
    %c0_i32_0 = arith.constant 0 : i32
    %c0_i32_1 = arith.constant 0 : i32
    return %c0_i32, %c0_i32_0 : i32, i32
  }
  func.func @transform_4(%arg0: i32) -> (i32, i32) {
    %c0_i32 = arith.constant 0 : i32
    %c0_i32_0 = arith.constant 0 : i32
    %c0_i32_1 = arith.constant 0 : i32
    return %c0_i32, %c0_i32_0 : i32, i32
  }
  func.func @transform_5(%arg0: i32) -> (i32, i32) {
    %c0_i32 = arith.constant 0 : i32
    %c0_i32_0 = arith.constant 0 : i32
    %c0_i32_1 = arith.constant 0 : i32
    return %c0_i32, %c0_i32_0 : i32, i32
  }
  func.func @transform_6(%arg0: i32) -> (i32, i32) {
    %c0_i32 = arith.constant 0 : i32
    %c0_i32_0 = arith.constant 0 : i32
    %c0_i32_1 = arith.constant 0 : i32
    return %c0_i32, %c0_i32_0 : i32, i32
  }
  func.func @transform_7(%arg0: i32) -> (i32, i32) {
    %c0_i32 = arith.constant 0 : i32
    %c0_i32_0 = arith.constant 0 : i32
    return %arg0, %c0_i32 : i32, i32
  }
}

</mosaic_0001>

<llo_original>
// kernel: tile.18
$region0: #{tile.18}
  #allocation0 [shape = 's32[1]{0}', space=sflag, size = 0x4, scoped, tag = 'scoped memory for tile.18']
  %s0 = inlined_call_operand.vmem [shape: f32[16], index: 0, kind: input, shape index: {}]
  %s1 = inlined_call_operand.vmem [shape: f32[9,16], index: 1, kind: output, shape index: {}]
  // Predicated region
  $region2: #{tile.18} parent=0 // pred_check
    _
  $region3: #{tile.18} parent=0 // pred_check_branch
    %3 = sbr.rel (0) target = $region5
  $region4: #{tile.18} parent=0 // pred_region
    _
  $region5: #{tile.18} parent=0 // pred_fallthru
    _
  %v4 = vld [vmem:[%s0] ss:$0 sm:$0xff]
  %5 = vst [vmem:[%s1] sm:$0xff] %v4
  %s6 = scalar_lea.vmem %s1, 8
  %7 = vst [vmem:[%s6] sm:$0xff] %v4

// kernel: mul.14
$region0: #{mul.14}
  %s0 = inlined_call_operand.vmem [shape: f32[9,16], index: 0, kind: input, shape index: {}]
  %s1 = inlined_call_operand.vmem [shape: f32[144], index: 1, kind: output, shape index: {}]
  $region1: #{mul.14} parent=0
    #allocation0 [shape = 'u8[4096]{0}', space=vmem, size = 0x1000, scoped, tag = 'scoped mem for output reshape']
    %s2 = smov 3
    %v3 = vld [vmem:[%s0] ss:$8 sm:%s2]
    %vm4 = vcmask 130048
    %5 = vst.msk [vmem:[#allocation0] sm:$0x3] %vm4, %v3
    %s6 = scalar_lea.vmem %s0, 7
    %v7 = vld [vmem:[%s6] sm:$0x1]
    %8 = vrot.lane.b32.xlu0 %v7, 112
    %v9 = vpop.permute.xlu0 %8
    %vm10 = vcmask 1048448
    %11 = vst.msk [vmem:[#allocation0] sm:$0x1] %vm10, %v9
    %s12 = scalar_lea.vmem %s0, 6
    %v13 = vld [vmem:[%s12] sm:$0x1]
    %14 = vrot.lane.b32.xlu0 %v13, 96
    %v15 = vpop.permute.xlu0 %14
    %vm16 = vcmask 917248
    %17 = vst.msk [vmem:[#allocation0] sm:$0x1] %vm16, %v15
    %s18 = scalar_lea.vmem %s0, 5
    %v19 = vld [vmem:[%s18] sm:$0x1]
    %20 = vrot.lane.b32.xlu0 %v19, 80
    %v21 = vpop.permute.xlu0 %20
    %vm22 = vcmask 786048
    %23 = vst.msk [vmem:[#allocation0] sm:$0x1] %vm22, %v21
    %s24 = scalar_lea.vmem %s0, 4
    %v25 = vld [vmem:[%s24] sm:$0x1]
    %26 = vrot.lane.b32.xlu0 %v25, 64
    %v27 = vpop.permute.xlu0 %26
    %vm28 = vcmask 654848
    %29 = vst.msk [vmem:[#allocation0] sm:$0x1] %vm28, %v27
    %s30 = scalar_lea.vmem %s0, 3
    %v31 = vld [vmem:[%s30] sm:$0x1]
    %32 = vrot.lane.b32.xlu0 %v31, 48
    %v33 = vpop.permute.xlu0 %32
    %vm34 = vcmask 523648
    %35 = vst.msk [vmem:[#allocation0] sm:$0x1] %vm34, %v33
    %s36 = scalar_lea.vmem %s0, 2
    %v37 = vld [vmem:[%s36] sm:$0x1]
    %38 = vrot.lane.b32.xlu0 %v37, 32
    %v39 = vpop.permute.xlu0 %38
    %vm40 = vcmask 392448
    %41 = vst.msk [vmem:[#allocation0] sm:$0x1] %vm40, %v39
    %s42 = scalar_lea.vmem %s0, 1
    %v43 = vld [vmem:[%s42] sm:$0x1]
    %44 = vrot.lane.b32.xlu0 %v43, 16
    %v45 = vpop.permute.xlu0 %44
    %vm46 = vcmask 261248
    %47 = vst.msk [vmem:[#allocation0] sm:$0x1] %vm46, %v45
    %s49 = sshllo.u32 0, 2
    %v51 = vld [vmem:[#allocation0] sm:%s49]
    %s52 = sshllo.u32 0, 2
    %53 = vst [vmem:[%s1] sm:%s52] %v51

// kernel: tile.28
$region0: #{tile.28}
  #allocation0 [shape = 's32[1]{0}', space=sflag, size = 0x4, scoped, tag = 'scoped memory for tile.28']
  %s0 = inlined_call_operand.vmem [shape: f32[16], index: 0, kind: input, shape index: {}]
  %s1 = inlined_call_operand.vmem [shape: f32[3,16], index: 1, kind: output, shape index: {}]
  // Predicated region
  $region2: #{tile.28} parent=0 // pred_check
    _
  $region3: #{tile.28} parent=0 // pred_check_branch
    %3 = sbr.rel (0) target = $region5
  $region4: #{tile.28} parent=0 // pred_region
    _
  $region5: #{tile.28} parent=0 // pred_fallthru
    _
  %v4 = vld [vmem:[%s0] ss:$0 sm:$0xff]
  %5 = vst [vmem:[%s1] sm:$0xf] %v4

// kernel: tile.29
$region0: #{tile.29}
  %s0 = inlined_call_operand.vmem [shape: f32[3,16], index: 0, kind: input, shape index: {}]
  %s1 = inlined_call_operand.vmem [shape: f32[48], index: 1, kind: output, shape index: {}]
  $region1: #{tile.29} parent=0
    #allocation0 [shape = 'u8[4096]{0}', space=vmem, size = 0x1000, scoped, tag = 'scoped mem for output reshape']
    #allocation1 [shape = 'u8[4096]{0}', space=vmem, size = 0x1000, scoped, tag = 'scoped mem for input reshape']
    %s3 = sshllo.u32 0, 4
    %v4 = vld [vmem:[%s0] sm:%s3]
    %5 = vst [vmem:[#allocation1] sm:%s3] %v4
    %v6 = vld [vmem:[#allocation1] sm:$0x1]
    %vm7 = vcmask 130048
    %8 = vst.msk [vmem:[#allocation0] sm:$0x1] %vm7, %v6
    %s9 = scalar_lea.vmem [#allocation1], 2
    %v10 = vld [vmem:[%s9] sm:$0x1]
    %11 = vrot.lane.b32.xlu0 %v10, 32
    %v12 = vpop.permute.xlu0 %11
    %vm13 = vcmask 392448
    %14 = vst.msk [vmem:[#allocation0] sm:$0x1] %vm13, %v12
    %s15 = scalar_lea.vmem [#allocation1], 1
    %v16 = vld [vmem:[%s15] sm:$0x1]
    %17 = vrot.lane.b32.xlu0 %v16, 16
    %v18 = vpop.permute.xlu0 %17
    %vm19 = vcmask 261248
    %20 = vst.msk [vmem:[#allocation0] sm:$0x1] %vm19, %v18
    %s22 = sshllo.u32 0, 1
    %v24 = vld [vmem:[#allocation0] sm:%s22]
    %s25 = sshllo.u32 0, 1
    %26 = vst [vmem:[%s1] sm:%s25] %v24

// kernel: conv_stem_forward.1
$region0: #{conv_stem_forward.1}
  #allocation0 [shape = 'u32[]', space=smem, size = 0x4, offset = 0x4, fixed_abs, tag = 'smem constant byte address 0x4 - core index']
  #allocation1 [shape = 'u32[144,128]{1,0:T(1,128)}', space=vmem, size = 0x12000, scoped, tag = 'internal scratch']
  %s0 = inlined_call_operand.vmem [shape: bf16[32,150], index: 0, kind: input, shape index: {}]
  %s1 = inlined_call_operand.vmem [shape: bf16[150,147], index: 1, kind: input, shape index: {}]
  %s2 = inlined_call_operand.vmem [shape: f32[1,147], index: 2, kind: input, shape index: {}]
  %s3 = inlined_call_operand.vmem [shape: bf16[147,32], index: 3, kind: input, shape index: {}]
  %s4 = inlined_call_operand.vmem [shape: f32[1,32], index: 4, kind: input, shape index: {}]
  %s5 = inlined_call_operand.vmem [shape: bf16[32,128], index: 5, kind: input, shape index: {}]
  %s6 = inlined_call_operand.vmem [shape: f32[1,128], index: 6, kind: input, shape index: {}]
  %s7 = inlined_call_operand.hbm [shape: f32[32,128], index: 7, kind: output, shape index: {}]
  %s8 = sld [smem:[#allocation0]]
  $region38: #{conv_stem_forward.1} parent=0
    _
  %s10 = ssub.s32 1, %s8
  %s11 = scalar_select 0, %s10, %s8
  $region1: #{conv_stem_forward.1} parent=0
    #allocation2 [shape = 'u8[16384]{0}', space=vmem, size = 0x4000, scoped, tag = 'output window, operand 0, single buffered']
    #allocation3 [shape = 's32[1]{0}', space=sflag, size = 0x4, scoped, tag = 'scoped memory for conv_stem_forward.1']
    %12 = vsyncpa [#allocation3], 0
    // Predicated region
    $region2: #{conv_stem_forward.1} parent=1 // pred_check
      _
    $region3: #{conv_stem_forward.1} parent=1 // pred_check_branch
      %14 = sbr.rel (0) target = $region5
    $region4: #{conv_stem_forward.1} parent=1 // pred_region
      _
    $region5: #{conv_stem_forward.1} parent=1 // pred_fallthru
      _
    // Predicated region
    $region6: #{conv_stem_forward.1} parent=1 // pred_check
      _
    $region7: #{conv_stem_forward.1} parent=1 // pred_check_branch
      %16 = sbr.rel (0) target = $region9
    $region8: #{conv_stem_forward.1} parent=1 // pred_region
      _
    $region9: #{conv_stem_forward.1} parent=1 // pred_fallthru
      _
    // Predicated region
    $region10: #{conv_stem_forward.1} parent=1 // pred_check
      _
    $region11: #{conv_stem_forward.1} parent=1 // pred_check_branch
      %18 = sbr.rel (0) target = $region13
    $region12: #{conv_stem_forward.1} parent=1 // pred_region
      _
    $region13: #{conv_stem_forward.1} parent=1 // pred_fallthru
      _
    // Predicated region
    $region14: #{conv_stem_forward.1} parent=1 // pred_check
      _
    $region15: #{conv_stem_forward.1} parent=1 // pred_check_branch
      %20 = sbr.rel (0) target = $region17
    $region16: #{conv_stem_forward.1} parent=1 // pred_region
      _
    $region17: #{conv_stem_forward.1} parent=1 // pred_fallthru
      _
    // Predicated region
    $region18: #{conv_stem_forward.1} parent=1 // pred_check
      _
    $region19: #{conv_stem_forward.1} parent=1 // pred_check_branch
      %22 = sbr.rel (0) target = $region21
    $region20: #{conv_stem_forward.1} parent=1 // pred_region
      _
    $region21: #{conv_stem_forward.1} parent=1 // pred_fallthru
      _
    // Predicated region
    $region22: #{conv_stem_forward.1} parent=1 // pred_check
      _
    $region23: #{conv_stem_forward.1} parent=1 // pred_check_branch
      %24 = sbr.rel (0) target = $region25
    $region24: #{conv_stem_forward.1} parent=1 // pred_region
      _
    $region25: #{conv_stem_forward.1} parent=1 // pred_fallthru
      _
    // Predicated region
    $region26: #{conv_stem_forward.1} parent=1 // pred_check
      _
    $region27: #{conv_stem_forward.1} parent=1 // pred_check_branch
      %26 = sbr.rel (0) target = $region29
    $region28: #{conv_stem_forward.1} parent=1 // pred_region
      _
    $region29: #{conv_stem_forward.1} parent=1 // pred_fallthru
      _
    %v28 = vld [vmem:[%s0] sm:$0xff]
    %v29 = vld [vmem:[%s0 + $0x8] sm:$0xff]
    %v30 = vld [vmem:[%s0 + $0x10] sm:$0xff]
    %v31 = vld [vmem:[%s0 + $0x18] sm:$0xff]
    %v32 = vld [vmem:[%s1] sm:$0xff]
    %v33 = vld [vmem:[%s1 + $0x8] sm:$0xff]
    %v34 = vld [vmem:[%s1 + $0x10] sm:$0xff]
    %v35 = vld [vmem:[%s1 + $0x18] sm:$0xff]
    %v36 = vld [vmem:[%s1 + $0x20] sm:$0xff]
    %v37 = vld [vmem:[%s1 + $0x28] sm:$0xff]
    %v38 = vld [vmem:[%s1 + $0x30] sm:$0xff]
    %v39 = vld [vmem:[%s1 + $0x38] sm:$0xff]
    %v40 = vld [vmem:[%s1 + $0x40] sm:$0xff]
    %v41 = vld [vmem:[%s1 + $0x48] sm:$0xff]
    %v42 = vld [vmem:[%s1 + $0x50] sm:$0xff]
    %v43 = vld [vmem:[%s1 + $0x58] sm:$0xff]
    %v44 = vld [vmem:[%s1 + $0x60] sm:$0xff]
    %v45 = vld [vmem:[%s1 + $0x68] sm:$0xff]
    %v46 = vld [vmem:[%s1 + $0x70] sm:$0xff]
    %v47 = vld [vmem:[%s1 + $0x78] sm:$0xff]
    %v48 = vld [vmem:[%s1 + $0x80] sm:$0xff]
    %v49 = vld [vmem:[%s1 + $0x88] sm:$0xff]
    %v50 = vld [vmem:[%s1 + $0x90] sm:$0x77]
    %v51 = vld [vmem:[%s2] sm:$0x3]
    %v53 = vlaneseq
    %v54 = vshrl.u32 %v53, 7
    %v55 = vsub.s32 0, %v54
    %v56 = vrot.slane %v51, %v55
    %v57 = vlaneseq
    %v58 = vshrl.u32 %v57, 7
    %v59 = vsub.s32 1, %v58
    %v60 = vrot.slane %v51, %v59
    %v67 = vunpack.c.l.b16 %v28
    %v68 = vunpack.c.h.b16 %v28
    %v69 = vunpack.c.l.b16 %v29
    %v70 = vunpack.c.h.b16 %v29
    %v71 = vunpack.c.l.b16 %v30
    %v72 = vunpack.c.h.b16 %v30
    %v73 = vunpack.c.l.b16 %v31
    %v74 = vunpack.c.h.b16 %v31
    %v75 = vpack.c.b16 %v69, %v67
    %v76 = vpack.c.b16 %v70, %v68
    %v77 = vpack.c.b16 %v73, %v71
    %v78 = vpack.c.b16 %v74, %v72
    %v100 = vunpack.c.l.b16 %v32
    %v101 = vunpack.c.h.b16 %v32
    %v102 = vunpack.c.l.b16 %v33
    %v103 = vunpack.c.h.b16 %v33
    %v104 = vunpack.c.l.b16 %v34
    %v105 = vunpack.c.h.b16 %v34
    %v106 = vunpack.c.l.b16 %v35
    %v107 = vunpack.c.h.b16 %v35
    %v108 = vunpack.c.l.b16 %v36
    %v109 = vunpack.c.h.b16 %v36
    %v110 = vunpack.c.l.b16 %v37
    %v111 = vunpack.c.h.b16 %v37
    %v112 = vunpack.c.l.b16 %v38
    %v113 = vunpack.c.h.b16 %v38
    %v114 = vunpack.c.l.b16 %v39
    %v115 = vunpack.c.h.b16 %v39
    %v116 = vunpack.c.l.b16 %v40
    %v117 = vunpack.c.h.b16 %v40
    %v118 = vunpack.c.l.b16 %v41
    %v119 = vunpack.c.h.b16 %v41
    %v120 = vunpack.c.l.b16 %v42
    %v121 = vunpack.c.h.b16 %v42
    %v122 = vunpack.c.l.b16 %v43
    %v123 = vunpack.c.h.b16 %v43
    %v124 = vunpack.c.l.b16 %v44
    %v125 = vunpack.c.h.b16 %v44
    %v126 = vunpack.c.l.b16 %v45
    %v127 = vunpack.c.h.b16 %v45
    %v128 = vunpack.c.l.b16 %v46
    %v129 = vunpack.c.h.b16 %v46
    %v130 = vunpack.c.l.b16 %v47
    %v131 = vunpack.c.h.b16 %v47
    %v132 = vunpack.c.l.b16 %v48
    %v133 = vunpack.c.h.b16 %v48
    %v134 = vunpack.c.l.b16 %v49
    %v135 = vunpack.c.h.b16 %v49
    %v136 = vunpack.c.l.b16 %v50
    %v137 = vunpack.c.h.b16 %v50
    %v138 = vpack.c.b16 %v102, %v100
    %v139 = vpack.c.b16 %v103, %v101
    %v140 = vpack.c.b16 %v106, %v104
    %v141 = vpack.c.b16 %v107, %v105
    %v142 = vpack.c.b16 %v110, %v108
    %v143 = vpack.c.b16 %v111, %v109
    %v144 = vpack.c.b16 %v114, %v112
    %v145 = vpack.c.b16 %v115, %v113
    %v146 = vpack.c.b16 %v118, %v116
    %v147 = vpack.c.b16 %v119, %v117
    %v148 = vpack.c.b16 %v122, %v120
    %v149 = vpack.c.b16 %v123, %v121
    %v150 = vpack.c.b16 %v126, %v124
    %v151 = vpack.c.b16 %v127, %v125
    %v152 = vpack.c.b16 %v130, %v128
    %v153 = vpack.c.b16 %v131, %v129
    %v154 = vpack.c.b16 %v134, %v132
    %v155 = vpack.c.b16 %v135, %v133
    %v156 = vpack.c.b16 %v136, %v136
    %v157 = vpack.c.b16 %v137, %v137
    %vm176 = vcmask 179200
    %v178 = vsel %vm176, %v76, 0
    %v181 = vsel %vm176, %v78, 0
    %vm183 = vcmask 1042432
    %v185 = vsel %vm183, %v156, 0
    %v188 = vsel %vm183, %v157, 0
    %190 = vmatprep.subr.bf16.mxu0 %v139
    %191 = vmatpush1.bf16.msra.mxu0 %v138
    %192 = vmatprep.subr.bf16.mxu0 %v141
    %193 = vmatpush1.bf16.msra.mxu0 %v140
    %194 = vmatprep.subr.bf16.mxu0 %v143
    %195 = vmatpush1.bf16.msra.mxu0 %v142
    %196 = vmatprep.subr.bf16.mxu0 %v145
    %197 = vmatpush1.bf16.msra.mxu0 %v144
    %198 = vmatprep.subr.bf16.mxu0 %v147
    %199 = vmatpush1.bf16.msra.mxu0 %v146
    %200 = vmatprep.subr.bf16.mxu0 %v149
    %201 = vmatpush1.bf16.msra.mxu0 %v148
    %202 = vmatprep.subr.bf16.mxu0 %v151
    %203 = vmatpush1.bf16.msra.mxu0 %v150
    %204 = vmatprep.subr.bf16.mxu0 %v153
    %205 = vmatpush1.bf16.msra.mxu0 %v152
    %206 = vmatprep.subr.bf16.mxu0 %v155
    %207 = vmatpush1.bf16.msra.mxu0 %v154
    %208 = vmatprep.subr.bf16.mxu0 %v188
    %209 = vmatpush1.bf16.msra.mxu0 %v185
    %210 = vmatprep.subr.bf16.mxu0 0
    %211 = vmatpush1.bf16.msra.mxu0 0
    %212 = vmatprep.subr.bf16.mxu0 0
    %213 = vmatpush1.bf16.msra.mxu0 0
    %214 = vmatprep.subr.bf16.mxu0 0
    %215 = vmatpush1.bf16.msra.mxu0 0
    %216 = vmatprep.subr.bf16.mxu0 0
    %217 = vmatpush1.bf16.msra.mxu0 0
    %218 = vmatprep.subr.bf16.mxu0 0
    %219 = vmatpush1.bf16.msra.mxu0 0
    %220 = vmatprep.subr.bf16.mxu0 0
    %221 = vmatpush1.bf16.msra.mxu0 0
    %222 = vmatprep.mubr.bf16.mxu0 %v178
    %223 = vmatmul.mubr.bf16.gmra.mrb[0].mxu0 %v75
    %v224 = vpop.f32.mrb[0].mxu0
    %v225 = vadd.f32 %v56, %v224
    %v226 = vpop.f32.mrb[0].mxu0
    %v227 = vadd.f32 %v60, %v226
    %v228 = vpop.f32.mrb[0].mxu0
    %v229 = vadd.f32 %v56, %v228
    %v230 = vpop.f32.mrb[0].mxu0
    %v231 = vadd.f32 %v60, %v230
    %232 = vmatprep.mubr.bf16.mxu0 %v181
    %233 = vmatmul.mubr.bf16.gmra.mrb[0].mxu0 %v77
    %v234 = vpop.f32.mrb[0].mxu0
    %v235 = vadd.f32 %v56, %v234
    %v236 = vpop.f32.mrb[0].mxu0
    %v237 = vadd.f32 %v60, %v236
    %v238 = vpop.f32.mrb[0].mxu0
    %v239 = vadd.f32 %v56, %v238
    %v240 = vpop.f32.mrb[0].mxu0
    %v241 = vadd.f32 %v60, %v240
    %242 = vdwg.mxu0
    %v243 = vmax.f32 %v225, 0.0
    %v244 = vmax.f32 %v227, 0.0
    %v245 = vmax.f32 %v229, 0.0
    %v246 = vmax.f32 %v231, 0.0
    %v247 = vmax.f32 %v235, 0.0
    %v248 = vmax.f32 %v237, 0.0
    %v249 = vmax.f32 %v239, 0.0
    %v250 = vmax.f32 %v241, 0.0
    %v251 = vpack.c.bf16 %v245, %v243
    %v252 = vpack.c.bf16 %v246, %v244
    %v253 = vpack.c.bf16 %v249, %v247
    %v254 = vpack.c.bf16 %v250, %v248
    %v255 = vld [vmem:[%s3] sm:$0xf]
    %v256 = vld [vmem:[%s3 + $0x4] sm:$0xf]
    %v257 = vld [vmem:[%s3 + $0x8] sm:$0xf]
    %v258 = vld [vmem:[%s3 + $0xc] sm:$0xf]
    %v259 = vld [vmem:[%s3 + $0x10] sm:$0xf]
    %v260 = vld [vmem:[%s3 + $0x14] sm:$0xf]
    %v261 = vld [vmem:[%s3 + $0x18] sm:$0xf]
    %v262 = vld [vmem:[%s3 + $0x1c] sm:$0xf]
    %v263 = vld [vmem:[%s3 + $0x20] sm:$0xf]
    %v264 = vld [vmem:[%s3 + $0x24] sm:$0xf]
    %v265 = vld [vmem:[%s3 + $0x28] sm:$0xf]
    %v266 = vld [vmem:[%s3 + $0x2c] sm:$0xf]
    %v267 = vld [vmem:[%s3 + $0x30] sm:$0xf]
    %v268 = vld [vmem:[%s3 + $0x34] sm:$0xf]
    %v269 = vld [vmem:[%s3 + $0x38] sm:$0xf]
    %v270 = vld [vmem:[%s3 + $0x3c] sm:$0xf]
    %v271 = vld [vmem:[%s3 + $0x40] sm:$0xf]
    %v272 = vld [vmem:[%s3 + $0x44] sm:$0xf]
    %v273 = vld [vmem:[%s3 + $0x48] sm:$0x3]
    %v274 = vld [vmem:[%s4] sm:$0x1]
    %v276 = vlaneseq
    %v277 = vshrl.u32 %v276, 7
    %v278 = vsub.s32 0, %v277
    %v279 = vrot.slane %v274, %v278
    %v300 = vunpack.c.l.b16 %v255
    %v301 = vunpack.c.l.b16 %v256
    %v302 = vunpack.c.l.b16 %v257
    %v303 = vunpack.c.l.b16 %v258
    %v304 = vunpack.c.l.b16 %v259
    %v305 = vunpack.c.l.b16 %v260
    %v306 = vunpack.c.l.b16 %v261
    %v307 = vunpack.c.l.b16 %v262
    %v308 = vunpack.c.l.b16 %v263
    %v309 = vunpack.c.l.b16 %v264
    %v310 = vunpack.c.l.b16 %v265
    %v311 = vunpack.c.l.b16 %v266
    %v312 = vunpack.c.l.b16 %v267
    %v313 = vunpack.c.l.b16 %v268
    %v314 = vunpack.c.l.b16 %v269
    %v315 = vunpack.c.l.b16 %v270
    %v316 = vunpack.c.l.b16 %v271
    %v317 = vunpack.c.l.b16 %v272
    %v318 = vunpack.c.l.b16 %v273
    %v319 = vpack.c.b16 %v301, %v300
    %v320 = vpack.c.b16 %v303, %v302
    %v321 = vpack.c.b16 %v305, %v304
    %v322 = vpack.c.b16 %v307, %v306
    %v323 = vpack.c.b16 %v309, %v308
    %v324 = vpack.c.b16 %v311, %v310
    %v325 = vpack.c.b16 %v313, %v312
    %v326 = vpack.c.b16 %v315, %v314
    %v327 = vpack.c.b16 %v317, %v316
    %v328 = vpack.c.b16 %v318, %v318
    %vm338 = vcmask 154624
    %v340 = vsel %vm338, %v252, 0
    %v343 = vsel %vm338, %v254, 0
    %vm345 = vcmask 1040384
    %vm346 = vcmask 1041408
    %v347 = vsel %vm345, 4294967295, 65535
    %v348 = vsel %vm346, %v347, 0
    %v350 = vand.u32 %v328, %v348
    %352 = vmatprep.subr.bf16.mxu0 0
    %353 = vmatpush1.bf16.msra.mxu0 %v319
    %354 = vmatprep.subr.bf16.mxu0 0
    %355 = vmatpush1.bf16.msra.mxu0 %v320
    %356 = vmatprep.subr.bf16.mxu0 0
    %357 = vmatpush1.bf16.msra.mxu0 %v321
    %358 = vmatprep.subr.bf16.mxu0 0
    %359 = vmatpush1.bf16.msra.mxu0 %v322
    %360 = vmatprep.subr.bf16.mxu0 0
    %361 = vmatpush1.bf16.msra.mxu0 %v323
    %362 = vmatprep.subr.bf16.mxu0 0
    %363 = vmatpush1.bf16.msra.mxu0 %v324
    %364 = vmatprep.subr.bf16.mxu0 0
    %365 = vmatpush1.bf16.msra.mxu0 %v325
    %366 = vmatprep.subr.bf16.mxu0 0
    %367 = vmatpush1.bf16.msra.mxu0 %v326
    %368 = vmatprep.subr.bf16.mxu0 0
    %369 = vmatpush1.bf16.msra.mxu0 %v327
    %370 = vmatprep.subr.bf16.mxu0 0
    %371 = vmatpush1.bf16.msra.mxu0 %v350
    %372 = vmatprep.subr.bf16.mxu0 0
    %373 = vmatpush1.bf16.msra.mxu0 0
    %374 = vmatprep.subr.bf16.mxu0 0
    %375 = vmatpush1.bf16.msra.mxu0 0
    %376 = vmatprep.subr.bf16.mxu0 0
    %377 = vmatpush1.bf16.msra.mxu0 0
    %378 = vmatprep.subr.bf16.mxu0 0
    %379 = vmatpush1.bf16.msra.mxu0 0
    %380 = vmatprep.subr.bf16.mxu0 0
    %381 = vmatpush1.bf16.msra.mxu0 0
    %382 = vmatprep.subr.bf16.mxu0 0
    %383 = vmatpush1.bf16.msra.mxu0 0
    %384 = vmatprep.mubr.bf16.mxu0 %v340
    %385 = vmatmul.mubr.bf16.gmra.mrb[0].mxu0 %v251
    %v386 = vpop.f32.mrb[0].mxu0
    %v387 = vadd.f32 %v279, %v386
    %v388 = vpop.f32.mrb[0].mxu0
    %v389 = vpop.f32.mrb[0].mxu0
    %v390 = vadd.f32 %v279, %v389
    %v391 = vpop.f32.mrb[0].mxu0
    %392 = vmatprep.mubr.bf16.mxu0 %v343
    %393 = vmatmul.mubr.bf16.gmra.mrb[0].mxu0 %v253
    %v394 = vpop.f32.mrb[0].mxu0
    %v395 = vadd.f32 %v279, %v394
    %v396 = vpop.f32.mrb[0].mxu0
    %v397 = vpop.f32.mrb[0].mxu0
    %v398 = vadd.f32 %v279, %v397
    %v399 = vpop.f32.mrb[0].mxu0
    %400 = vdwg.mxu0
    %v401 = vmax.f32 %v387, 0.0
    %v402 = vmax.f32 %v390, 0.0
    %v403 = vmax.f32 %v395, 0.0
    %v404 = vmax.f32 %v398, 0.0
    %v405 = vpack.c.bf16 %v402, %v401
    %v406 = vpack.c.bf16 %v404, %v403
    %v407 = vld [vmem:[%s5] sm:$0xf]
    %v408 = vld [vmem:[%s5 + $0x4] sm:$0xf]
    %v409 = vld [vmem:[%s5 + $0x8] sm:$0xf]
    %v410 = vld [vmem:[%s5 + $0xc] sm:$0xf]
    %v411 = vld [vmem:[%s6] sm:$0x1]
    %v413 = vlaneseq
    %v414 = vshrl.u32 %v413, 7
    %v415 = vsub.s32 0, %v414
    %v416 = vrot.slane %v411, %v415
    %v422 = vunpack.c.l.b16 %v407
    %v423 = vunpack.c.l.b16 %v408
    %v424 = vunpack.c.l.b16 %v409
    %v425 = vunpack.c.l.b16 %v410
    %v426 = vpack.c.b16 %v423, %v422
    %v427 = vpack.c.b16 %v425, %v424
    %vm430 = vcmask 261120
    %v432 = vsel %vm430, %v405, 0
    %v435 = vsel %vm430, %v406, 0
    %437 = vmatprep.subr.bf16.mxu0 0
    %438 = vmatpush1.bf16.msra.mxu0 %v426
    %439 = vmatprep.subr.bf16.mxu0 0
    %440 = vmatpush1.bf16.msra.mxu0 %v427
    %441 = vmatprep.subr.bf16.mxu0 0
    %442 = vmatpush1.bf16.msra.mxu0 0
    %443 = vmatprep.subr.bf16.mxu0 0
    %444 = vmatpush1.bf16.msra.mxu0 0
    %445 = vmatprep.subr.bf16.mxu0 0
    %446 = vmatpush1.bf16.msra.mxu0 0
    %447 = vmatprep.subr.bf16.mxu0 0
    %448 = vmatpush1.bf16.msra.mxu0 0
    %449 = vmatprep.subr.bf16.mxu0 0
    %450 = vmatpush1.bf16.msra.mxu0 0
    %451 = vmatprep.subr.bf16.mxu0 0
    %452 = vmatpush1.bf16.msra.mxu0 0
    %453 = vmatprep.subr.bf16.mxu0 0
    %454 = vmatpush1.bf16.msra.mxu0 0
    %455 = vmatprep.subr.bf16.mxu0 0
    %456 = vmatpush1.bf16.msra.mxu0 0
    %457 = vmatprep.subr.bf16.mxu0 0
    %458 = vmatpush1.bf16.msra.mxu0 0
    %459 = vmatprep.subr.bf16.mxu0 0
    %460 = vmatpush1.bf16.msra.mxu0 0
    %461 = vmatprep.subr.bf16.mxu0 0
    %462 = vmatpush1.bf16.msra.mxu0 0
    %463 = vmatprep.subr.bf16.mxu0 0
    %464 = vmatpush1.bf16.msra.mxu0 0
    %465 = vmatprep.subr.bf16.mxu0 0
    %466 = vmatpush1.bf16.msra.mxu0 0
    %467 = vmatprep.subr.bf16.mxu0 0
    %468 = vmatpush1.bf16.msra.mxu0 0
    %469 = vmatprep.mubr.bf16.mxu0 0
    %470 = vmatmul.mubr.bf16.gmra.mrb[0].mxu0 %v432
    %v471 = vpop.f32.mrb[0].mxu0
    %v472 = vadd.f32 %v416, %v471
    %v473 = vpop.f32.mrb[0].mxu0
    %v474 = vpop.f32.mrb[0].mxu0
    %v475 = vadd.f32 %v416, %v474
    %v476 = vpop.f32.mrb[0].mxu0
    %477 = vmatprep.mubr.bf16.mxu0 0
    %478 = vmatmul.mubr.bf16.gmra.mrb[0].mxu0 %v435
    %v479 = vpop.f32.mrb[0].mxu0
    %v480 = vadd.f32 %v416, %v479
    %v481 = vpop.f32.mrb[0].mxu0
    %v482 = vpop.f32.mrb[0].mxu0
    %v483 = vadd.f32 %v416, %v482
    %v484 = vpop.f32.mrb[0].mxu0
    %485 = vdwg.mxu0
    %486 = vst [vmem:[#allocation2] sm:$0xff] %v472
    %487 = vst [vmem:[#allocation2 + $0x8] sm:$0xff] %v475
    %488 = vst [vmem:[#allocation2 + $0x10] sm:$0xff] %v480
    %489 = vst [vmem:[#allocation2 + $0x18] sm:$0xff] %v483
    // Predicated region
    $region30: #{conv_stem_forward.1} parent=1 // pred_check
      _
    $region31: #{conv_stem_forward.1} parent=1 // pred_check_branch
      %491 = sbr.rel (0) target = $region33
    $region32: #{conv_stem_forward.1} parent=1 // pred_region
      %s493 = ssub.s32 512, 512
      %494 = vsyncadd [#allocation3], %s493
      %s495 = sshll.u32 [#allocation2], 4
      %s496 = int_to_ptr.vmem [resolvable:$true] %s495
      %501 = dma.vmem_to_hbm [thread:$0]  %s496, 512, %s7, [#allocation3], 128, 128, 8
    $region33: #{conv_stem_forward.1} parent=1 // pred_fallthru
      _
    // Predicated region
    $region34: #{conv_stem_forward.1} parent=1 // pred_check
      _
    $region35: #{conv_stem_forward.1} parent=1 // pred_check_branch
      %503 = sbr.rel (0) target = $region37
    $region36: #{conv_stem_forward.1} parent=1 // pred_region
      %504 = dma.done [#allocation3], 512
    $region37: #{conv_stem_forward.1} parent=1 // pred_fallthru
      _
    %505 = vsyncpa [#allocation3], 1

</llo_original>
